<compile_context>
chip_gen: v7x
topology: tpu7x:2x2x1
jax: 0.10.0
libtpu: 0.0.40
codegen_flags: <defaults>
</compile_context>

<pallas_src>
import functools

import jax
import jax.numpy as jnp
from jax.experimental import pallas as pl
from jax.experimental.pallas import tpu as pltpu


def _make_mlp_kernel(n_layers):
    """Kernel for an n_layers-deep MLP: ReLU between layers, none after the last."""

    def kernel(x_ref, *refs):
        o_ref = refs[-1]
        wb = refs[:-1]                       # w0, b0, w1, b1, ..., w_{L-1}, b_{L-1}
        h = x_ref[...]
        for i in range(n_layers):
            w = wb[2 * i][...]
            b = wb[2 * i + 1][...]
            h = jnp.dot(h, w, preferred_element_type=jnp.float32) + b
            if i < n_layers - 1:
                h = jnp.maximum(h, 0.0)      # hidden-layer activation (ReLU)
        o_ref[...] = h.astype(o_ref.dtype)

    return kernel


def _round_up(x, m):
    return (x + m - 1) // m * m


@functools.partial(jax.jit, static_argnames=("tile_b",))
def critic_forward(x, params, *, tile_b=512):
    """CriticNet.forward: x [B, D_in] -> value [B, 1].

    params: list of (w, b) pairs, w stored input-major [in, out], b as [1, out].
    """
    B, D_in = x.shape
    n_layers = len(params)
    out_dim = params[-1][0].shape[1]

    # Row-block size: multiple of 8, no larger than the (padded) batch.
    tb = min(_round_up(tile_b, 8), _round_up(B, 8))
    Bp = _round_up(B, tb)
    if Bp != B:
        x = jnp.pad(x, ((0, Bp - B), (0, 0)))

    grid = (Bp // tb,)

    # x / output tiled over rows; weights & biases resident across the grid.
    in_specs = [pl.BlockSpec((tb, D_in), lambda i: (i, 0))]
    flat_inputs = [x]
    for w, b in params:
        in_specs.append(pl.BlockSpec(w.shape, lambda i: (0, 0)))
        in_specs.append(pl.BlockSpec(b.shape, lambda i: (0, 0)))
        flat_inputs.extend([w, b])

    flops = 2 * Bp * sum(w.shape[0] * w.shape[1] for w, _ in params)
    bytes_accessed = 4 * (Bp * D_in + Bp * out_dim
                          + sum(w.size + b.size for w, b in params))

    out = pl.pallas_call(
        _make_mlp_kernel(n_layers),
        out_shape=jax.ShapeDtypeStruct((Bp, out_dim), jnp.float32),
        grid=grid,
        in_specs=in_specs,
        out_specs=pl.BlockSpec((tb, out_dim), lambda i: (i, 0)),
        compiler_params=pltpu.CompilerParams(
            dimension_semantics=("parallel",)),
        cost_estimate=pl.CostEstimate(
            flops=flops, transcendentals=0, bytes_accessed=bytes_accessed),
    )(*flat_inputs)

    return out[:B]


def init_params(key, in_dim, hidden_sizes, out_dim=1):
    """Deterministic synthetic parameters for the CriticNet MLP (input-major weights)."""
    dims = [in_dim] + list(hidden_sizes) + [out_dim]
    params = []
    keys = jax.random.split(key, len(dims) - 1)
    for i, (d_in, d_out) in enumerate(zip(dims[:-1], dims[1:])):
        kw, kb = jax.random.split(keys[i])
        scale = 1.0 / jnp.sqrt(jnp.float32(d_in))
        w = jax.random.uniform(kw, (d_in, d_out), jnp.float32, -scale, scale)
        b = jax.random.uniform(kb, (1, d_out), jnp.float32, -scale, scale)
        params.append((w, b))
    return params


def _reference_forward(x, params):
    """Pure-JAX reference for correctness checking."""
    h = x
    for i, (w, b) in enumerate(params):
        h = h @ w + b
        if i < len(params) - 1:
            h = jnp.maximum(h, 0.0)
    return h


if __name__ == "__main__":
    # CriticNet(independent=True): input dim = state_dim + action_dim + n_agents.
    state_dim, action_dim, n_agents = 32, 8, 3
    hidden_sizes = (64, 64)
    batch = 8                      # e.g. batch_size * n_agents rows, already flattened
    in_dim = state_dim + action_dim + n_agents      # 43

    key = jax.random.PRNGKey(0)
    k_obs, k_act, k_id, k_par = jax.random.split(key, 4)
    obs = jax.random.normal(k_obs, (batch, state_dim), jnp.float32)
    act = jax.random.normal(k_act, (batch, action_dim), jnp.float32)
    ids = jax.nn.one_hot(
        jax.random.randint(k_id, (batch,), 0, n_agents), n_agents, dtype=jnp.float32)
    # The policy concatenates [obs, actions, agent_ids] before calling
    # CriticNet.forward; the module (and this kernel) consumes x directly.
    x = jnp.concatenate([obs, act, ids], axis=-1)

    params = init_params(k_par, in_dim, hidden_sizes, out_dim=1)

    v = critic_forward(x, params)
    jax.block_until_ready(v)

    v_ref = _reference_forward(x, params)
    assert v.shape == (batch, 1)
    assert jnp.allclose(v, v_ref, atol=1e-5, rtol=1e-5)

    print("KERNEL_OK")
</pallas_src>

<mosaic_0001>
module attributes {stable_mosaic.version = 11 : i64} {
  func.func @kernel(%arg0: i32, %arg1: memref<8x43xf32, #tpu.memory_space<vmem>>, %arg2: memref<43x64xf32, #tpu.memory_space<vmem>>, %arg3: memref<1x64xf32, #tpu.memory_space<vmem>>, %arg4: memref<64x64xf32, #tpu.memory_space<vmem>>, %arg5: memref<1x64xf32, #tpu.memory_space<vmem>>, %arg6: memref<64x1xf32, #tpu.memory_space<vmem>>, %arg7: memref<1x1xf32, #tpu.memory_space<vmem>>, %arg8: memref<8x1xf32, #tpu.memory_space<vmem>>) attributes {dimension_semantics = [#tpu.dimension_semantics<parallel>], iteration_bounds = array<i64: 1>, scalar_prefetch = 0 : i64, scratch_operands = 0 : i64, tpu.core_type = #tpu.core_type<tc>, window_params = [{transform_indices = @transform_0, window_bounds = array<i64: 8, 43>}, {pipeline_mode = #tpu.pipeline_mode<synchronous>, transform_indices = @transform_1, window_bounds = array<i64: 43, 64>}, {pipeline_mode = #tpu.pipeline_mode<synchronous>, transform_indices = @transform_2, window_bounds = array<i64: 1, 64>}, {pipeline_mode = #tpu.pipeline_mode<synchronous>, transform_indices = @transform_3, window_bounds = array<i64: 64, 64>}, {pipeline_mode = #tpu.pipeline_mode<synchronous>, transform_indices = @transform_4, window_bounds = array<i64: 1, 64>}, {pipeline_mode = #tpu.pipeline_mode<synchronous>, transform_indices = @transform_5, window_bounds = array<i64: 64, 1>}, {pipeline_mode = #tpu.pipeline_mode<synchronous>, transform_indices = @transform_6, window_bounds = array<i64: 1, 1>}, {transform_indices = @transform_7, window_bounds = array<i64: 8, 1>}]} {
    %c0 = arith.constant 0 : index
    %c0_0 = arith.constant 0 : index
    %0 = vector.load %arg1[%c0, %c0_0] : memref<8x43xf32, #tpu.memory_space<vmem>>, vector<8x43xf32>
    %c0_1 = arith.constant 0 : index
    %c0_2 = arith.constant 0 : index
    %1 = vector.load %arg2[%c0_1, %c0_2] : memref<43x64xf32, #tpu.memory_space<vmem>>, vector<43x64xf32>
    %c0_3 = arith.constant 0 : index
    %c0_4 = arith.constant 0 : index
    %2 = vector.load %arg3[%c0_3, %c0_4] : memref<1x64xf32, #tpu.memory_space<vmem>>, vector<1x64xf32>
    %cst = arith.constant dense<0.000000e+00> : vector<8x64xf32>
    %3 = tpu.matmul %0, %1, %cst {dimension_numbers = #tpu.dot_dimension_numbers<[1], [0], [0], [1], [0, 0, 1, 1], [], []>} : vector<8x43xf32>, vector<43x64xf32>, vector<8x64xf32> -> vector<8x64xf32>
    %4 = vector.broadcast %2 : vector<1x64xf32> to vector<8x64xf32>
    %5 = arith.addf %3, %4 : vector<8x64xf32>
    %cst_5 = arith.constant 0.000000e+00 : f32
    %6 = vector.broadcast %cst_5 : f32 to vector<8x64xf32>
    %7 = arith.maximumf %5, %6 : vector<8x64xf32>
    %c0_6 = arith.constant 0 : index
    %c0_7 = arith.constant 0 : index
    %8 = vector.load %arg4[%c0_6, %c0_7] : memref<64x64xf32, #tpu.memory_space<vmem>>, vector<64x64xf32>
    %c0_8 = arith.constant 0 : index
    %c0_9 = arith.constant 0 : index
    %9 = vector.load %arg5[%c0_8, %c0_9] : memref<1x64xf32, #tpu.memory_space<vmem>>, vector<1x64xf32>
    %cst_10 = arith.constant dense<0.000000e+00> : vector<8x64xf32>
    %10 = tpu.matmul %7, %8, %cst_10 {dimension_numbers = #tpu.dot_dimension_numbers<[1], [0], [0], [1], [0, 0, 1, 1], [], []>} : vector<8x64xf32>, vector<64x64xf32>, vector<8x64xf32> -> vector<8x64xf32>
    %11 = vector.broadcast %9 : vector<1x64xf32> to vector<8x64xf32>
    %12 = arith.addf %10, %11 : vector<8x64xf32>
    %cst_11 = arith.constant 0.000000e+00 : f32
    %13 = vector.broadcast %cst_11 : f32 to vector<8x64xf32>
    %14 = arith.maximumf %12, %13 : vector<8x64xf32>
    %c0_12 = arith.constant 0 : index
    %c0_13 = arith.constant 0 : index
    %15 = vector.load %arg6[%c0_12, %c0_13] : memref<64x1xf32, #tpu.memory_space<vmem>>, vector<64x1xf32>
    %c0_14 = arith.constant 0 : index
    %c0_15 = arith.constant 0 : index
    %16 = vector.load %arg7[%c0_14, %c0_15] : memref<1x1xf32, #tpu.memory_space<vmem>>, vector<1x1xf32>
    %cst_16 = arith.constant dense<0.000000e+00> : vector<8x1xf32>
    %17 = tpu.matmul %14, %15, %cst_16 {dimension_numbers = #tpu.dot_dimension_numbers<[1], [0], [0], [1], [0, 0, 1, 1], [], []>} : vector<8x64xf32>, vector<64x1xf32>, vector<8x1xf32> -> vector<8x1xf32>
    %18 = vector.broadcast %16 : vector<1x1xf32> to vector<8x1xf32>
    %19 = arith.addf %17, %18 : vector<8x1xf32>
    %c0_17 = arith.constant 0 : index
    %c0_18 = arith.constant 0 : index
    %20 = vector.load %arg8[%c0_17, %c0_18] : memref<8x1xf32, #tpu.memory_space<vmem>>, vector<8x1xf32>
    tpu.vector_store %arg8[%c0_17, %c0_18], %19 {strides = array<i32>} : memref<8x1xf32, #tpu.memory_space<vmem>>, vector<8x1xf32>,
    return
  }
  func.func @transform_0(%arg0: i32) -> (i32, i32) {
    %c0_i32 = arith.constant 0 : i32
    %c0_i32_0 = arith.constant 0 : i32
    return %arg0, %c0_i32 : i32, i32
  }
  func.func @transform_1(%arg0: i32) -> (i32, i32) {
    %c0_i32 = arith.constant 0 : i32
    %c0_i32_0 = arith.constant 0 : i32
    %c0_i32_1 = arith.constant 0 : i32
    return %c0_i32, %c0_i32_0 : i32, i32
  }
  func.func @transform_2(%arg0: i32) -> (i32, i32) {
    %c0_i32 = arith.constant 0 : i32
    %c0_i32_0 = arith.constant 0 : i32
    %c0_i32_1 = arith.constant 0 : i32
    return %c0_i32, %c0_i32_0 : i32, i32
  }
  func.func @transform_3(%arg0: i32) -> (i32, i32) {
    %c0_i32 = arith.constant 0 : i32
    %c0_i32_0 = arith.constant 0 : i32
    %c0_i32_1 = arith.constant 0 : i32
    return %c0_i32, %c0_i32_0 : i32, i32
  }
  func.func @transform_4(%arg0: i32) -> (i32, i32) {
    %c0_i32 = arith.constant 0 : i32
    %c0_i32_0 = arith.constant 0 : i32
    %c0_i32_1 = arith.constant 0 : i32
    return %c0_i32, %c0_i32_0 : i32, i32
  }
  func.func @transform_5(%arg0: i32) -> (i32, i32) {
    %c0_i32 = arith.constant 0 : i32
    %c0_i32_0 = arith.constant 0 : i32
    %c0_i32_1 = arith.constant 0 : i32
    return %c0_i32, %c0_i32_0 : i32, i32
  }
  func.func @transform_6(%arg0: i32) -> (i32, i32) {
    %c0_i32 = arith.constant 0 : i32
    %c0_i32_0 = arith.constant 0 : i32
    %c0_i32_1 = arith.constant 0 : i32
    return %c0_i32, %c0_i32_0 : i32, i32
  }
  func.func @transform_7(%arg0: i32) -> (i32, i32) {
    %c0_i32 = arith.constant 0 : i32
    %c0_i32_0 = arith.constant 0 : i32
    return %arg0, %c0_i32 : i32, i32
  }
}

</mosaic_0001>

<llo_original>
// kernel: critic_forward.1
$region0: #{critic_forward.1}
  #allocation0 [shape = 'u32[]', space=smem, size = 0x4, offset = 0x4, fixed_abs, tag = 'smem constant byte address 0x4 - core index']
  #allocation1 [shape = 'u32[144,128]{1,0:T(1,128)}', space=vmem, size = 0x12000, scoped, tag = 'internal scratch']
  #allocation2 [shape = 'f32[1,1]{1,0:T(1,128)S(1)}', space=vmem, size = 0x200, scoped, tag = 'scoped memory for critic_forward.1']
  %s0 = inlined_call_operand.vmem [shape: f32[8,43], index: 0, kind: input, shape index: {}]
  %s1 = inlined_call_operand.hbm [shape: f32[43,64], index: 1, kind: input, shape index: {}]
  %s2 = inlined_call_operand.vmem [shape: f32[1,64], index: 2, kind: input, shape index: {}]
  %s3 = inlined_call_operand.vmem [shape: f32[64,64], index: 3, kind: input, shape index: {}]
  %s4 = inlined_call_operand.vmem [shape: f32[1,64], index: 4, kind: input, shape index: {}]
  %s5 = inlined_call_operand.vmem [shape: f32[64,1], index: 5, kind: input, shape index: {}]
  %s6 = inlined_call_operand.<no memory space> [shape: f32[1,1], index: 6, kind: input, shape index: {}]
  %s7 = inlined_call_operand.vmem [shape: f32[8,1], index: 7, kind: output, shape index: {}]
  %s8 = sld [smem:[#allocation0]]
  $region42: #{critic_forward.1} parent=0
    _
  %s10 = ssub.s32 1, %s8
  %s11 = scalar_select 0, %s10, %s8
  %v12 = vstv %s6
  %13 = vst [vmem:[#allocation2] sm:$0x1] %v12
  $region1: #{critic_forward.1} parent=0
    #allocation3 [shape = 'u8[24576]{0}', space=vmem, size = 0x6000, scoped, tag = 'input window, operand 1, single buffered']
    #allocation4 [shape = 's32[1]{0}', space=sflag, size = 0x4, scoped, tag = 'scoped memory for critic_forward.1']
    %14 = vsyncpa [#allocation4], 0
    // Predicated region
    $region2: #{critic_forward.1} parent=1 // pred_check
      _
    $region3: #{critic_forward.1} parent=1 // pred_check_branch
      %16 = sbr.rel (0) target = $region5
    $region4: #{critic_forward.1} parent=1 // pred_region
      _
    $region5: #{critic_forward.1} parent=1 // pred_fallthru
      _
    // Predicated region
    $region6: #{critic_forward.1} parent=1 // pred_check
      _
    $region7: #{critic_forward.1} parent=1 // pred_check_branch
      %18 = sbr.rel (0) target = $region9
    $region8: #{critic_forward.1} parent=1 // pred_region
      %s20 = ssub.s32 768, 768
      %21 = vsyncadd [#allocation4], %s20
      %s22 = sshll.u32 [#allocation3], 4
      %s23 = int_to_ptr.vmem [resolvable:$true] %s22
      %28 = dma.hbm_to_vmem [thread:$0]  %s1, 768, %s23, [#allocation4], 128, 128, 8
    $region9: #{critic_forward.1} parent=1 // pred_fallthru
      _
    // Predicated region
    $region10: #{critic_forward.1} parent=1 // pred_check
      _
    $region11: #{critic_forward.1} parent=1 // pred_check_branch
      %30 = sbr.rel (0) target = $region13
    $region12: #{critic_forward.1} parent=1 // pred_region
      _
    $region13: #{critic_forward.1} parent=1 // pred_fallthru
      _
    // Predicated region
    $region14: #{critic_forward.1} parent=1 // pred_check
      _
    $region15: #{critic_forward.1} parent=1 // pred_check_branch
      %32 = sbr.rel (0) target = $region17
    $region16: #{critic_forward.1} parent=1 // pred_region
      _
    $region17: #{critic_forward.1} parent=1 // pred_fallthru
      _
    // Predicated region
    $region18: #{critic_forward.1} parent=1 // pred_check
      _
    $region19: #{critic_forward.1} parent=1 // pred_check_branch
      %34 = sbr.rel (0) target = $region21
    $region20: #{critic_forward.1} parent=1 // pred_region
      _
    $region21: #{critic_forward.1} parent=1 // pred_fallthru
      _
    // Predicated region
    $region22: #{critic_forward.1} parent=1 // pred_check
      _
    $region23: #{critic_forward.1} parent=1 // pred_check_branch
      %36 = sbr.rel (0) target = $region25
    $region24: #{critic_forward.1} parent=1 // pred_region
      _
    $region25: #{critic_forward.1} parent=1 // pred_fallthru
      _
    // Predicated region
    $region26: #{critic_forward.1} parent=1 // pred_check
      _
    $region27: #{critic_forward.1} parent=1 // pred_check_branch
      %38 = sbr.rel (0) target = $region29
    $region28: #{critic_forward.1} parent=1 // pred_region
      _
    $region29: #{critic_forward.1} parent=1 // pred_fallthru
      _
    // Predicated region
    $region30: #{critic_forward.1} parent=1 // pred_check
      _
    $region31: #{critic_forward.1} parent=1 // pred_check_branch
      %40 = sbr.rel (0) target = $region33
    $region32: #{critic_forward.1} parent=1 // pred_region
      %41 = dma.done [#allocation4], 768
    $region33: #{critic_forward.1} parent=1 // pred_fallthru
      _
    %v42 = vld [vmem:[%s0] sm:$0xff]
    %v43 = vld [vmem:[#allocation3] sm:$0xff]
    %v44 = vld [vmem:[#allocation3 + $0x8] sm:$0xff]
    %v45 = vld [vmem:[#allocation3 + $0x10] sm:$0xff]
    %v46 = vld [vmem:[#allocation3 + $0x18] sm:$0xff]
    %v47 = vld [vmem:[#allocation3 + $0x20] sm:$0xff]
    %v48 = vld [vmem:[#allocation3 + $0x28] sm:$0x7]
    %v49 = vld [vmem:[%s2] sm:$0x1]
    %v51 = vlaneseq
    %v52 = vshrl.u32 %v51, 7
    %v53 = vsub.s32 0, %v52
    %v54 = vrot.slane %v49, %v53
    %vm56 = vcmask 351232
    %v58 = vsel %vm56, %v42, 0
    %vm60 = vcmask 1042432
    %v62 = vsel %vm60, %v48, 0
    %64 = vmatprep.subr.mxu0 0.0
    %65 = vmatpush1.msra.mxu0 %v43
    %66 = vmatprep.subr.mxu0 0.0
    %67 = vmatpush1.msra.mxu0 %v44
    %68 = vmatprep.subr.mxu0 0.0
    %69 = vmatpush1.msra.mxu0 %v45
    %70 = vmatprep.subr.mxu0 0.0
    %71 = vmatpush1.msra.mxu0 %v46
    %72 = vmatprep.subr.mxu0 0.0
    %73 = vmatpush1.msra.mxu0 %v47
    %74 = vmatprep.subr.mxu0 0.0
    %75 = vmatpush1.msra.mxu0 %v62
    %76 = vmatprep.subr.mxu0 0.0
    %77 = vmatpush1.msra.mxu0 0.0
    %78 = vmatprep.subr.mxu0 0.0
    %79 = vmatpush1.msra.mxu0 0.0
    %80 = vmatprep.subr.mxu0 0.0
    %81 = vmatpush1.msra.mxu0 0.0
    %82 = vmatprep.subr.mxu0 0.0
    %83 = vmatpush1.msra.mxu0 0.0
    %84 = vmatprep.subr.mxu0 0.0
    %85 = vmatpush1.msra.mxu0 0.0
    %86 = vmatprep.subr.mxu0 0.0
    %87 = vmatpush1.msra.mxu0 0.0
    %88 = vmatprep.subr.mxu0 0.0
    %89 = vmatpush1.msra.mxu0 0.0
    %90 = vmatprep.subr.mxu0 0.0
    %91 = vmatpush1.msra.mxu0 0.0
    %92 = vmatprep.subr.mxu0 0.0
    %93 = vmatpush1.msra.mxu0 0.0
    %94 = vmatprep.subr.mxu0 0.0
    %95 = vmatpush1.msra.mxu0 0.0
    %96 = vmatprep.subr.mxu0 0.0
    %97 = vmatpush1.msra.mxu0 0.0
    %98 = vmatprep.subr.mxu0 0.0
    %99 = vmatpush1.msra.mxu0 0.0
    %100 = vmatprep.subr.mxu0 0.0
    %101 = vmatpush1.msra.mxu0 0.0
    %102 = vmatprep.subr.mxu0 0.0
    %103 = vmatpush1.msra.mxu0 0.0
    %104 = vmatprep.subr.mxu0 0.0
    %105 = vmatpush1.msra.mxu0 0.0
    %106 = vmatprep.subr.mxu0 0.0
    %107 = vmatpush1.msra.mxu0 0.0
    %108 = vmatprep.subr.mxu0 0.0
    %109 = vmatpush1.msra.mxu0 0.0
    %110 = vmatprep.subr.mxu0 0.0
    %111 = vmatpush1.msra.mxu0 0.0
    %112 = vmatprep.subr.mxu0 0.0
    %113 = vmatpush1.msra.mxu0 0.0
    %114 = vmatprep.subr.mxu0 0.0
    %115 = vmatpush1.msra.mxu0 0.0
    %116 = vmatprep.subr.mxu0 0.0
    %117 = vmatpush1.msra.mxu0 0.0
    %118 = vmatprep.subr.mxu0 0.0
    %119 = vmatpush1.msra.mxu0 0.0
    %120 = vmatprep.subr.mxu0 0.0
    %121 = vmatpush1.msra.mxu0 0.0
    %122 = vmatprep.subr.mxu0 0.0
    %123 = vmatpush1.msra.mxu0 0.0
    %124 = vmatprep.subr.mxu0 0.0
    %125 = vmatpush1.msra.mxu0 0.0
    %126 = vmatprep.subr.mxu0 0.0
    %127 = vmatpush1.msra.mxu0 0.0
    %128 = vmatprep.mubr.f32.mxu0 0.0
    %129 = vmatmul.mubr.f32.gmra.mrb[0].mxu0 %v58
    %v130 = vpop.f32.mrb[0].mxu0
    %v131 = vadd.f32 %v54, %v130
    %v132 = vpop.f32.mrb[0].mxu0
    %133 = vdwg.mxu0
    %v134 = vmax.f32 %v131, 0.0
    %v135 = vld [vmem:[%s3] sm:$0xff]
    %v136 = vld [vmem:[%s3 + $0x8] sm:$0xff]
    %v137 = vld [vmem:[%s3 + $0x10] sm:$0xff]
    %v138 = vld [vmem:[%s3 + $0x18] sm:$0xff]
    %v139 = vld [vmem:[%s3 + $0x20] sm:$0xff]
    %v140 = vld [vmem:[%s3 + $0x28] sm:$0xff]
    %v141 = vld [vmem:[%s3 + $0x30] sm:$0xff]
    %v142 = vld [vmem:[%s3 + $0x38] sm:$0xff]
    %v143 = vld [vmem:[%s4] sm:$0x1]
    %v145 = vlaneseq
    %v146 = vshrl.u32 %v145, 7
    %v147 = vsub.s32 0, %v146
    %v148 = vrot.slane %v143, %v147
    %vm150 = vcmask 523264
    %v152 = vsel %vm150, %v134, 0
    %154 = vmatprep.subr.mxu0 0.0
    %155 = vmatpush1.msra.mxu0 %v135
    %156 = vmatprep.subr.mxu0 0.0
    %157 = vmatpush1.msra.mxu0 %v136
    %158 = vmatprep.subr.mxu0 0.0
    %159 = vmatpush1.msra.mxu0 %v137
    %160 = vmatprep.subr.mxu0 0.0
    %161 = vmatpush1.msra.mxu0 %v138
    %162 = vmatprep.subr.mxu0 0.0
    %163 = vmatpush1.msra.mxu0 %v139
    %164 = vmatprep.subr.mxu0 0.0
    %165 = vmatpush1.msra.mxu0 %v140
    %166 = vmatprep.subr.mxu0 0.0
    %167 = vmatpush1.msra.mxu0 %v141
    %168 = vmatprep.subr.mxu0 0.0
    %169 = vmatpush1.msra.mxu0 %v142
    %170 = vmatprep.subr.mxu0 0.0
    %171 = vmatpush1.msra.mxu0 0.0
    %172 = vmatprep.subr.mxu0 0.0
    %173 = vmatpush1.msra.mxu0 0.0
    %174 = vmatprep.subr.mxu0 0.0
    %175 = vmatpush1.msra.mxu0 0.0
    %176 = vmatprep.subr.mxu0 0.0
    %177 = vmatpush1.msra.mxu0 0.0
    %178 = vmatprep.subr.mxu0 0.0
    %179 = vmatpush1.msra.mxu0 0.0
    %180 = vmatprep.subr.mxu0 0.0
    %181 = vmatpush1.msra.mxu0 0.0
    %182 = vmatprep.subr.mxu0 0.0
    %183 = vmatpush1.msra.mxu0 0.0
    %184 = vmatprep.subr.mxu0 0.0
    %185 = vmatpush1.msra.mxu0 0.0
    %186 = vmatprep.subr.mxu0 0.0
    %187 = vmatpush1.msra.mxu0 0.0
    %188 = vmatprep.subr.mxu0 0.0
    %189 = vmatpush1.msra.mxu0 0.0
    %190 = vmatprep.subr.mxu0 0.0
    %191 = vmatpush1.msra.mxu0 0.0
    %192 = vmatprep.subr.mxu0 0.0
    %193 = vmatpush1.msra.mxu0 0.0
    %194 = vmatprep.subr.mxu0 0.0
    %195 = vmatpush1.msra.mxu0 0.0
    %196 = vmatprep.subr.mxu0 0.0
    %197 = vmatpush1.msra.mxu0 0.0
    %198 = vmatprep.subr.mxu0 0.0
    %199 = vmatpush1.msra.mxu0 0.0
    %200 = vmatprep.subr.mxu0 0.0
    %201 = vmatpush1.msra.mxu0 0.0
    %202 = vmatprep.subr.mxu0 0.0
    %203 = vmatpush1.msra.mxu0 0.0
    %204 = vmatprep.subr.mxu0 0.0
    %205 = vmatpush1.msra.mxu0 0.0
    %206 = vmatprep.subr.mxu0 0.0
    %207 = vmatpush1.msra.mxu0 0.0
    %208 = vmatprep.subr.mxu0 0.0
    %209 = vmatpush1.msra.mxu0 0.0
    %210 = vmatprep.subr.mxu0 0.0
    %211 = vmatpush1.msra.mxu0 0.0
    %212 = vmatprep.subr.mxu0 0.0
    %213 = vmatpush1.msra.mxu0 0.0
    %214 = vmatprep.subr.mxu0 0.0
    %215 = vmatpush1.msra.mxu0 0.0
    %216 = vmatprep.subr.mxu0 0.0
    %217 = vmatpush1.msra.mxu0 0.0
    %218 = vmatprep.mubr.f32.mxu0 0.0
    %219 = vmatmul.mubr.f32.gmra.mrb[0].mxu0 %v152
    %v220 = vpop.f32.mrb[0].mxu0
    %v221 = vadd.f32 %v148, %v220
    %v222 = vpop.f32.mrb[0].mxu0
    %223 = vdwg.mxu0
    %v224 = vmax.f32 %v221, 0.0
    %v225 = vld [vmem:[%s5] sm:$0xff]
    %v226 = vld [vmem:[%s5 + $0x8] sm:$0xff]
    %v227 = vld [vmem:[%s5 + $0x10] sm:$0xff]
    %v228 = vld [vmem:[%s5 + $0x18] sm:$0xff]
    %v229 = vld [vmem:[%s5 + $0x20] sm:$0xff]
    %v230 = vld [vmem:[%s5 + $0x28] sm:$0xff]
    %v231 = vld [vmem:[%s5 + $0x30] sm:$0xff]
    %v232 = vld [vmem:[%s5 + $0x38] sm:$0xff]
    %v233 = vld [vmem:[#allocation2] sm:$0x1]
    %v235 = vlaneseq
    %v236 = vshrl.u32 %v235, 7
    %v237 = vsub.s32 0, %v236
    %v238 = vrot.slane %v233, %v237
    %v241 = vsel %vm150, %v224, 0
    %243 = vmatprep.subr.mxu0 0.0
    %244 = vmatpush1.msra.mxu0 %v225
    %245 = vmatprep.subr.mxu0 0.0
    %246 = vmatpush1.msra.mxu0 %v226
    %247 = vmatprep.subr.mxu0 0.0
    %248 = vmatpush1.msra.mxu0 %v227
    %249 = vmatprep.subr.mxu0 0.0
    %250 = vmatpush1.msra.mxu0 %v228
    %251 = vmatprep.subr.mxu0 0.0
    %252 = vmatpush1.msra.mxu0 %v229
    %253 = vmatprep.subr.mxu0 0.0
    %254 = vmatpush1.msra.mxu0 %v230
    %255 = vmatprep.subr.mxu0 0.0
    %256 = vmatpush1.msra.mxu0 %v231
    %257 = vmatprep.subr.mxu0 0.0
    %258 = vmatpush1.msra.mxu0 %v232
    %259 = vmatprep.subr.mxu0 0.0
    %260 = vmatpush1.msra.mxu0 0.0
    %261 = vmatprep.subr.mxu0 0.0
    %262 = vmatpush1.msra.mxu0 0.0
    %263 = vmatprep.subr.mxu0 0.0
    %264 = vmatpush1.msra.mxu0 0.0
    %265 = vmatprep.subr.mxu0 0.0
    %266 = vmatpush1.msra.mxu0 0.0
    %267 = vmatprep.subr.mxu0 0.0
    %268 = vmatpush1.msra.mxu0 0.0
    %269 = vmatprep.subr.mxu0 0.0
    %270 = vmatpush1.msra.mxu0 0.0
    %271 = vmatprep.subr.mxu0 0.0
    %272 = vmatpush1.msra.mxu0 0.0
    %273 = vmatprep.subr.mxu0 0.0
    %274 = vmatpush1.msra.mxu0 0.0
    %275 = vmatprep.subr.mxu0 0.0
    %276 = vmatpush1.msra.mxu0 0.0
    %277 = vmatprep.subr.mxu0 0.0
    %278 = vmatpush1.msra.mxu0 0.0
    %279 = vmatprep.subr.mxu0 0.0
    %280 = vmatpush1.msra.mxu0 0.0
    %281 = vmatprep.subr.mxu0 0.0
    %282 = vmatpush1.msra.mxu0 0.0
    %283 = vmatprep.subr.mxu0 0.0
    %284 = vmatpush1.msra.mxu0 0.0
    %285 = vmatprep.subr.mxu0 0.0
    %286 = vmatpush1.msra.mxu0 0.0
    %287 = vmatprep.subr.mxu0 0.0
    %288 = vmatpush1.msra.mxu0 0.0
    %289 = vmatprep.subr.mxu0 0.0
    %290 = vmatpush1.msra.mxu0 0.0
    %291 = vmatprep.subr.mxu0 0.0
    %292 = vmatpush1.msra.mxu0 0.0
    %293 = vmatprep.subr.mxu0 0.0
    %294 = vmatpush1.msra.mxu0 0.0
    %295 = vmatprep.subr.mxu0 0.0
    %296 = vmatpush1.msra.mxu0 0.0
    %297 = vmatprep.subr.mxu0 0.0
    %298 = vmatpush1.msra.mxu0 0.0
    %299 = vmatprep.subr.mxu0 0.0
    %300 = vmatpush1.msra.mxu0 0.0
    %301 = vmatprep.subr.mxu0 0.0
    %302 = vmatpush1.msra.mxu0 0.0
    %303 = vmatprep.subr.mxu0 0.0
    %304 = vmatpush1.msra.mxu0 0.0
    %305 = vmatprep.subr.mxu0 0.0
    %306 = vmatpush1.msra.mxu0 0.0
    %307 = vmatprep.mubr.f32.mxu0 0.0
    %308 = vmatmul.mubr.f32.gmra.mrb[0].mxu0 %v241
    %v309 = vpop.f32.mrb[0].mxu0
    %v310 = vadd.f32 %v238, %v309
    %v311 = vpop.f32.mrb[0].mxu0
    %312 = vdwg.mxu0
    %vm313 = vcmask 7168
    %314 = vst.msk [vmem:[%s7] sm:$0xff] %vm313, %v310
    // Predicated region
    $region34: #{critic_forward.1} parent=1 // pred_check
      _
    $region35: #{critic_forward.1} parent=1 // pred_check_branch
      %316 = sbr.rel (0) target = $region37
    $region36: #{critic_forward.1} parent=1 // pred_region
      _
    $region37: #{critic_forward.1} parent=1 // pred_fallthru
      _
    // Predicated region
    $region38: #{critic_forward.1} parent=1 // pred_check
      _
    $region39: #{critic_forward.1} parent=1 // pred_check_branch
      %318 = sbr.rel (0) target = $region41
    $region40: #{critic_forward.1} parent=1 // pred_region
      _
    $region41: #{critic_forward.1} parent=1 // pred_fallthru
      _
    %319 = vsyncpa [#allocation4], 1

</llo_original>
